<compile_context>
chip_gen: v5e
topology: v5e:2x2
jax: 0.10.0
libtpu: 0.0.40
codegen_flags: <defaults>
</compile_context>

<pallas_src>
import jax
import jax.numpy as jnp
import numpy as np
from jax.experimental import pallas as pl
from jax.experimental.pallas import tpu as pltpu


# ----------------------------------------------------------------------------
# Pallas kernel: fused 1x1 conv (batched matmul over the block's images) + bias
# ----------------------------------------------------------------------------
def _outconv_kernel(x_ref, w_ref, b_ref, o_ref):
    # x_ref: (nb, Cin, T)   -- nb images' channel-major slabs, T spatial lanes
    # w_ref: (Cout, Cin)    -- conv weight (kernel_size=1), activation dtype
    # b_ref: (Cout, 1)      -- conv bias, f32
    # o_ref: (nb, Cout, T)  -- lane-dense output tile
    acc = jnp.einsum(
        "oc,bct->bot", w_ref[...], x_ref[...],
        preferred_element_type=jnp.float32)              # (nb, Cout, T) f32
    o_ref[...] = (acc + b_ref[...]).astype(o_ref.dtype)  # (Cout,1) broadcasts


# ----------------------------------------------------------------------------
# Tile selection: VMEM-budget-driven spatial tile + batch folding
# ----------------------------------------------------------------------------
def _pick_tiles(N, Cin, Cout, HW, itemsize):
    """Return (nb, t): images per block and spatial lanes per block."""
    target = 2 << 20  # aim ~2 MiB of input bytes per grid step

    # Spatial tile: multiple of 128 lanes (or the full HW when it is small /
    # already a multiple), as wide as the budget allows.
    t_budget = max(128, (target // max(Cin * itemsize, 1)) // 128 * 128)
    if HW % 128 == 0:
        t = min(t_budget, HW)
    elif HW < 128:
        t = HW                              # full-dim block for tiny images
    else:
        t = min(t_budget, (HW // 128) * 128)  # partial edge block handles tail

    # Fold several images into one block if a single image's slab is small.
    per_image = Cin * t * itemsize
    nb = int(max(1, min(N, target // max(per_image, 1))))

    # Cap the double-buffered working set (input + output blocks) so it fits
    # v5e's 16 MiB default scoped VMEM and leaves headroom on v7x (64 MiB).
    cap = 12 << 20

    def working_set(nb_, t_):
        return 2 * nb_ * (Cin + Cout) * t_ * itemsize

    while nb > 1 and working_set(nb, t) > cap:
        nb -= 1
    while t > 128 and working_set(nb, t) > cap:
        t -= 128
    return nb, t


# ----------------------------------------------------------------------------
# Wrapper: OutConv.forward
# ----------------------------------------------------------------------------
def outconv_1x1(x_nchw, weight, bias):
    """nn.Conv2d(in_channels, out_channels, kernel_size=1) forward, NCHW.

    weight: (Cout, Cin, 1, 1) (PyTorch layout) or (Cout, Cin).
    bias:   (Cout,)
    """
    N, Cin, H, W = x_nchw.shape
    Cout = weight.shape[0]
    HW = H * W

    w = weight.reshape(Cout, Cin).astype(x_nchw.dtype)   # matmul in x's dtype
    b = bias.reshape(Cout, 1).astype(jnp.float32)        # f32 bias epilogue

    nb, t = _pick_tiles(N, Cin, Cout, HW, jnp.dtype(x_nchw.dtype).itemsize)

    x = x_nchw.reshape(N, Cin, HW)                       # free: contiguous NCHW
    grid = (pl.cdiv(N, nb), pl.cdiv(HW, t))              # partial edge blocks OK

    out = pl.pallas_call(
        _outconv_kernel,
        out_shape=jax.ShapeDtypeStruct((N, Cout, HW), x_nchw.dtype),
        grid_spec=pltpu.PrefetchScalarGridSpec(
            num_scalar_prefetch=0,
            grid=grid,
            in_specs=[
                pl.BlockSpec((nb, Cin, t), lambda i, j: (i, 0, j)),
                pl.BlockSpec((Cout, Cin), lambda i, j: (0, 0)),
                pl.BlockSpec((Cout, 1), lambda i, j: (0, 0)),
            ],
            out_specs=pl.BlockSpec((nb, Cout, t), lambda i, j: (i, 0, j)),
        ),
        compiler_params=pltpu.CompilerParams(
            dimension_semantics=("parallel", "parallel")),
    )(x, w, b)

    return out.reshape(N, Cout, H, W)


# ----------------------------------------------------------------------------
# Pure-JAX reference (for correctness check)
# ----------------------------------------------------------------------------
def _ref_outconv(x_nchw, weight, bias):
    w = weight.reshape(weight.shape[0], weight.shape[1])
    return jnp.einsum("oi,nihw->nohw", w, x_nchw) + bias[None, :, None, None]


# ----------------------------------------------------------------------------
# Main
# ----------------------------------------------------------------------------
if __name__ == "__main__":
    # OutConv(in_channels=8, out_channels=4) on a small NCHW input.
    N, CIN, COUT, H, W = 2, 8, 4, 16, 16

    key = jax.random.PRNGKey(0)
    kx, kw, kb = jax.random.split(key, 3)

    x = jax.random.normal(kx, (N, CIN, H, W), jnp.float32)
    # PyTorch Conv2d(kernel_size=1) weight layout: (Cout, Cin, 1, 1)
    weight = jax.random.normal(kw, (COUT, CIN, 1, 1), jnp.float32) * (1.0 / np.sqrt(CIN))
    bias = 0.1 * jax.random.normal(kb, (COUT,), jnp.float32)

    out = jax.jit(outconv_1x1)(x, weight, bias)
    out = jax.block_until_ready(out)
    assert out.shape == (N, COUT, H, W), out.shape

    ref = jax.block_until_ready(_ref_outconv(x, weight, bias))
    np.testing.assert_allclose(np.asarray(out), np.asarray(ref),
                               rtol=1e-5, atol=1e-5)

    print("KERNEL_OK")
</pallas_src>

<mosaic_0001>
module attributes {stable_mosaic.version = 11 : i64} {
  func.func @_outconv_kernel(%arg0: i32, %arg1: i32, %arg2: memref<2x8x256xf32, #tpu.memory_space<vmem>>, %arg3: memref<4x8xf32, #tpu.memory_space<vmem>>, %arg4: memref<4x1xf32, #tpu.memory_space<vmem>>, %arg5: memref<2x4x256xf32, #tpu.memory_space<vmem>>) attributes {dimension_semantics = [#tpu.dimension_semantics<parallel>, #tpu.dimension_semantics<parallel>], iteration_bounds = array<i64: 1, 1>, scalar_prefetch = 0 : i64, scratch_operands = 0 : i64, tpu.core_type = #tpu.core_type<tc>, window_params = [{transform_indices = @transform_0, window_bounds = array<i64: 2, 8, 256>}, {pipeline_mode = #tpu.pipeline_mode<synchronous>, transform_indices = @transform_1, window_bounds = array<i64: 4, 8>}, {pipeline_mode = #tpu.pipeline_mode<synchronous>, transform_indices = @transform_2, window_bounds = array<i64: 4, 1>}, {transform_indices = @transform_3, window_bounds = array<i64: 2, 4, 256>}]} {
    %c0 = arith.constant 0 : index
    %c0_0 = arith.constant 0 : index
    %0 = vector.load %arg3[%c0, %c0_0] : memref<4x8xf32, #tpu.memory_space<vmem>>, vector<4x8xf32>
    %c0_1 = arith.constant 0 : index
    %c0_2 = arith.constant 0 : index
    %c0_3 = arith.constant 0 : index
    %1 = vector.load %arg2[%c0_1, %c0_2, %c0_3] : memref<2x8x256xf32, #tpu.memory_space<vmem>>, vector<2x8x256xf32>
    "tpu.trace_start"() <{level = 10 : i32, message = "oc,bct->bot"}> : () -> ()
    %cst = arith.constant dense<0.000000e+00> : vector<2x256x4xf32>
    %2 = tpu.matmul %1, %0, %cst {dimension_numbers = #tpu.dot_dimension_numbers<[1], [1], [0, 2], [0], [0, 0, 0, 2, 1, 0], [], []>} : vector<2x8x256xf32>, vector<4x8xf32>, vector<2x256x4xf32> -> vector<2x256x4xf32>
    %3 = tpu.transpose %2, [0, 2, 1] : vector<2x256x4xf32> -> vector<2x4x256xf32>
    "tpu.trace_stop"() : () -> ()
    %c0_4 = arith.constant 0 : index
    %c0_5 = arith.constant 0 : index
    %4 = vector.load %arg4[%c0_4, %c0_5] : memref<4x1xf32, #tpu.memory_space<vmem>>, vector<4x1xf32>
    %5 = vector.shape_cast %4 : vector<4x1xf32> to vector<1x4x1xf32>
    %6 = vector.broadcast %5 : vector<1x4x1xf32> to vector<2x4x256xf32>
    %7 = arith.addf %3, %6 : vector<2x4x256xf32>
    %c0_6 = arith.constant 0 : index
    %c0_7 = arith.constant 0 : index
    %c0_8 = arith.constant 0 : index
    %8 = vector.load %arg5[%c0_6, %c0_7, %c0_8] : memref<2x4x256xf32, #tpu.memory_space<vmem>>, vector<2x4x256xf32>
    tpu.vector_store %arg5[%c0_6, %c0_7, %c0_8], %7 {strides = array<i32>} : memref<2x4x256xf32, #tpu.memory_space<vmem>>, vector<2x4x256xf32>,
    return
  }
  func.func @transform_0(%arg0: i32, %arg1: i32) -> (i32, i32, i32) {
    %c0_i32 = arith.constant 0 : i32
    %c0_i32_0 = arith.constant 0 : i32
    return %arg0, %c0_i32, %arg1 : i32, i32, i32
  }
  func.func @transform_1(%arg0: i32, %arg1: i32) -> (i32, i32) {
    %c0_i32 = arith.constant 0 : i32
    %c0_i32_0 = arith.constant 0 : i32
    %c0_i32_1 = arith.constant 0 : i32
    return %c0_i32, %c0_i32_0 : i32, i32
  }
  func.func @transform_2(%arg0: i32, %arg1: i32) -> (i32, i32) {
    %c0_i32 = arith.constant 0 : i32
    %c0_i32_0 = arith.constant 0 : i32
    %c0_i32_1 = arith.constant 0 : i32
    return %c0_i32, %c0_i32_0 : i32, i32
  }
  func.func @transform_3(%arg0: i32, %arg1: i32) -> (i32, i32, i32) {
    %c0_i32 = arith.constant 0 : i32
    %c0_i32_0 = arith.constant 0 : i32
    return %arg0, %c0_i32, %arg1 : i32, i32, i32
  }
}

</mosaic_0001>

<llo_original>
// kernel: outconv_1x1.1
$region0: #{outconv_1x1.1}
  #allocation0 [shape = 'u32[]', space=smem, size = 0x4, offset = 0x4, fixed_abs, tag = 'smem constant byte address 0x4 - core index']
  #allocation1 [shape = 'u32[72,128]{1,0:T(1,128)}', space=vmem, size = 0x9000, scoped, tag = 'internal scratch']
  %s0 = inlined_call_operand.vmem [shape: f32[2,8,256], index: 0, kind: input, shape index: {}]
  %s1 = inlined_call_operand.vmem [shape: f32[4,8], index: 1, kind: input, shape index: {}]
  %s2 = inlined_call_operand.vmem [shape: f32[4,1], index: 2, kind: input, shape index: {}]
  %s3 = inlined_call_operand.vmem [shape: f32[2,4,256], index: 3, kind: output, shape index: {}]
  %s4 = sld [smem:[#allocation0]]
  $region22: #{outconv_1x1.1} parent=0
    _
  %s6 = ssub.s32 1, %s4
  %s7 = scalar_select 0, %s6, %s4
  // Predicated region
  $region2: #{outconv_1x1.1} parent=0 // pred_check
    _
  $region3: #{outconv_1x1.1} parent=0 // pred_check_branch
    %9 = sbr.rel (0) target = $region5
  $region4: #{outconv_1x1.1} parent=0 // pred_region
    _
  $region5: #{outconv_1x1.1} parent=0 // pred_fallthru
    _
  // Predicated region
  $region6: #{outconv_1x1.1} parent=0 // pred_check
    _
  $region7: #{outconv_1x1.1} parent=0 // pred_check_branch
    %11 = sbr.rel (0) target = $region9
  $region8: #{outconv_1x1.1} parent=0 // pred_region
    _
  $region9: #{outconv_1x1.1} parent=0 // pred_fallthru
    _
  // Predicated region
  $region10: #{outconv_1x1.1} parent=0 // pred_check
    _
  $region11: #{outconv_1x1.1} parent=0 // pred_check_branch
    %13 = sbr.rel (0) target = $region13
  $region12: #{outconv_1x1.1} parent=0 // pred_region
    _
  $region13: #{outconv_1x1.1} parent=0 // pred_fallthru
    _
  %v14 = vld [vmem:[%s1] sm:$0xf]
  %v15 = vld [vmem:[%s0] sm:$0xff]
  %v16 = vld [vmem:[%s0 + $0x8] sm:$0xff]
  %v17 = vld [vmem:[%s0 + $0x10] sm:$0xff]
  %v18 = vld [vmem:[%s0 + $0x18] sm:$0xff]
  %19 = vxpose.xlu0.b32.start [1/16] %v15, 128
  %20 = vxpose.xlu0.b32.cont [2/16] 0.0, 128
  %21 = vxpose.xlu0.b32.cont [3/16] 0.0, 128
  %22 = vxpose.xlu0.b32.cont [4/16] 0.0, 128
  %23 = vxpose.xlu0.b32.cont [5/16] 0.0, 128
  %24 = vxpose.xlu0.b32.cont [6/16] 0.0, 128
  %25 = vxpose.xlu0.b32.cont [7/16] 0.0, 128
  %26 = vxpose.xlu0.b32.cont [8/16] 0.0, 128
  %27 = vxpose.xlu0.b32.cont [9/16] 0.0, 128
  %28 = vxpose.xlu0.b32.cont [10/16] 0.0, 128
  %29 = vxpose.xlu0.b32.cont [11/16] 0.0, 128
  %30 = vxpose.xlu0.b32.cont [12/16] 0.0, 128
  %31 = vxpose.xlu0.b32.cont [13/16] 0.0, 128
  %32 = vxpose.xlu0.b32.cont [14/16] 0.0, 128
  %33 = vxpose.xlu0.b32.cont [15/16] 0.0, 128
  %34 = vxpose.xlu0.b32.end [16/16] 0.0, 128
  %v35 = vpop.trf.xlu0
  %v36 = vpop.trf.xlu0
  %v37 = vpop.trf.xlu0
  %v38 = vpop.trf.xlu0
  %v39 = vpop.trf.xlu0
  %v40 = vpop.trf.xlu0
  %v41 = vpop.trf.xlu0
  %v42 = vpop.trf.xlu0
  %v43 = vpop.trf.xlu0
  %v44 = vpop.trf.xlu0
  %v45 = vpop.trf.xlu0
  %v46 = vpop.trf.xlu0
  %v47 = vpop.trf.xlu0
  %v48 = vpop.trf.xlu0
  %v49 = vpop.trf.xlu0
  %v50 = vpop.trf.xlu0
  %51 = vxpose.xlu0.b32.start [1/16] %v16, 128
  %52 = vxpose.xlu0.b32.cont [2/16] 0.0, 128
  %53 = vxpose.xlu0.b32.cont [3/16] 0.0, 128
  %54 = vxpose.xlu0.b32.cont [4/16] 0.0, 128
  %55 = vxpose.xlu0.b32.cont [5/16] 0.0, 128
  %56 = vxpose.xlu0.b32.cont [6/16] 0.0, 128
  %57 = vxpose.xlu0.b32.cont [7/16] 0.0, 128
  %58 = vxpose.xlu0.b32.cont [8/16] 0.0, 128
  %59 = vxpose.xlu0.b32.cont [9/16] 0.0, 128
  %60 = vxpose.xlu0.b32.cont [10/16] 0.0, 128
  %61 = vxpose.xlu0.b32.cont [11/16] 0.0, 128
  %62 = vxpose.xlu0.b32.cont [12/16] 0.0, 128
  %63 = vxpose.xlu0.b32.cont [13/16] 0.0, 128
  %64 = vxpose.xlu0.b32.cont [14/16] 0.0, 128
  %65 = vxpose.xlu0.b32.cont [15/16] 0.0, 128
  %66 = vxpose.xlu0.b32.end [16/16] 0.0, 128
  %v67 = vpop.trf.xlu0
  %v68 = vpop.trf.xlu0
  %v69 = vpop.trf.xlu0
  %v70 = vpop.trf.xlu0
  %v71 = vpop.trf.xlu0
  %v72 = vpop.trf.xlu0
  %v73 = vpop.trf.xlu0
  %v74 = vpop.trf.xlu0
  %v75 = vpop.trf.xlu0
  %v76 = vpop.trf.xlu0
  %v77 = vpop.trf.xlu0
  %v78 = vpop.trf.xlu0
  %v79 = vpop.trf.xlu0
  %v80 = vpop.trf.xlu0
  %v81 = vpop.trf.xlu0
  %v82 = vpop.trf.xlu0
  %83 = vxpose.xlu0.b32.start [1/16] %v17, 128
  %84 = vxpose.xlu0.b32.cont [2/16] 0.0, 128
  %85 = vxpose.xlu0.b32.cont [3/16] 0.0, 128
  %86 = vxpose.xlu0.b32.cont [4/16] 0.0, 128
  %87 = vxpose.xlu0.b32.cont [5/16] 0.0, 128
  %88 = vxpose.xlu0.b32.cont [6/16] 0.0, 128
  %89 = vxpose.xlu0.b32.cont [7/16] 0.0, 128
  %90 = vxpose.xlu0.b32.cont [8/16] 0.0, 128
  %91 = vxpose.xlu0.b32.cont [9/16] 0.0, 128
  %92 = vxpose.xlu0.b32.cont [10/16] 0.0, 128
  %93 = vxpose.xlu0.b32.cont [11/16] 0.0, 128
  %94 = vxpose.xlu0.b32.cont [12/16] 0.0, 128
  %95 = vxpose.xlu0.b32.cont [13/16] 0.0, 128
  %96 = vxpose.xlu0.b32.cont [14/16] 0.0, 128
  %97 = vxpose.xlu0.b32.cont [15/16] 0.0, 128
  %98 = vxpose.xlu0.b32.end [16/16] 0.0, 128
  %v99 = vpop.trf.xlu0
  %v100 = vpop.trf.xlu0
  %v101 = vpop.trf.xlu0
  %v102 = vpop.trf.xlu0
  %v103 = vpop.trf.xlu0
  %v104 = vpop.trf.xlu0
  %v105 = vpop.trf.xlu0
  %v106 = vpop.trf.xlu0
  %v107 = vpop.trf.xlu0
  %v108 = vpop.trf.xlu0
  %v109 = vpop.trf.xlu0
  %v110 = vpop.trf.xlu0
  %v111 = vpop.trf.xlu0
  %v112 = vpop.trf.xlu0
  %v113 = vpop.trf.xlu0
  %v114 = vpop.trf.xlu0
  %115 = vxpose.xlu0.b32.start [1/16] %v18, 128
  %116 = vxpose.xlu0.b32.cont [2/16] 0.0, 128
  %117 = vxpose.xlu0.b32.cont [3/16] 0.0, 128
  %118 = vxpose.xlu0.b32.cont [4/16] 0.0, 128
  %119 = vxpose.xlu0.b32.cont [5/16] 0.0, 128
  %120 = vxpose.xlu0.b32.cont [6/16] 0.0, 128
  %121 = vxpose.xlu0.b32.cont [7/16] 0.0, 128
  %122 = vxpose.xlu0.b32.cont [8/16] 0.0, 128
  %123 = vxpose.xlu0.b32.cont [9/16] 0.0, 128
  %124 = vxpose.xlu0.b32.cont [10/16] 0.0, 128
  %125 = vxpose.xlu0.b32.cont [11/16] 0.0, 128
  %126 = vxpose.xlu0.b32.cont [12/16] 0.0, 128
  %127 = vxpose.xlu0.b32.cont [13/16] 0.0, 128
  %128 = vxpose.xlu0.b32.cont [14/16] 0.0, 128
  %129 = vxpose.xlu0.b32.cont [15/16] 0.0, 128
  %130 = vxpose.xlu0.b32.end [16/16] 0.0, 128
  %v131 = vpop.trf.xlu0
  %v132 = vpop.trf.xlu0
  %v133 = vpop.trf.xlu0
  %v134 = vpop.trf.xlu0
  %v135 = vpop.trf.xlu0
  %v136 = vpop.trf.xlu0
  %v137 = vpop.trf.xlu0
  %v138 = vpop.trf.xlu0
  %v139 = vpop.trf.xlu0
  %v140 = vpop.trf.xlu0
  %v141 = vpop.trf.xlu0
  %v142 = vpop.trf.xlu0
  %v143 = vpop.trf.xlu0
  %v144 = vpop.trf.xlu0
  %v145 = vpop.trf.xlu0
  %v146 = vpop.trf.xlu0
  %vm147 = vcmask 64512
  %v149 = vsel %vm147, %v35, 0
  %v152 = vsel %vm147, %v36, 0
  %v155 = vsel %vm147, %v37, 0
  %v158 = vsel %vm147, %v38, 0
  %v161 = vsel %vm147, %v39, 0
  %v164 = vsel %vm147, %v40, 0
  %v167 = vsel %vm147, %v41, 0
  %v170 = vsel %vm147, %v42, 0
  %v173 = vsel %vm147, %v43, 0
  %v176 = vsel %vm147, %v44, 0
  %v179 = vsel %vm147, %v45, 0
  %v182 = vsel %vm147, %v46, 0
  %v185 = vsel %vm147, %v47, 0
  %v188 = vsel %vm147, %v48, 0
  %v191 = vsel %vm147, %v49, 0
  %v194 = vsel %vm147, %v50, 0
  %v197 = vsel %vm147, %v67, 0
  %v200 = vsel %vm147, %v68, 0
  %v203 = vsel %vm147, %v69, 0
  %v206 = vsel %vm147, %v70, 0
  %v209 = vsel %vm147, %v71, 0
  %v212 = vsel %vm147, %v72, 0
  %v215 = vsel %vm147, %v73, 0
  %v218 = vsel %vm147, %v74, 0
  %v221 = vsel %vm147, %v75, 0
  %v224 = vsel %vm147, %v76, 0
  %v227 = vsel %vm147, %v77, 0
  %v230 = vsel %vm147, %v78, 0
  %v233 = vsel %vm147, %v79, 0
  %v236 = vsel %vm147, %v80, 0
  %v239 = vsel %vm147, %v81, 0
  %v242 = vsel %vm147, %v82, 0
  %v245 = vsel %vm147, %v99, 0
  %v248 = vsel %vm147, %v100, 0
  %v251 = vsel %vm147, %v101, 0
  %v254 = vsel %vm147, %v102, 0
  %v257 = vsel %vm147, %v103, 0
  %v260 = vsel %vm147, %v104, 0
  %v263 = vsel %vm147, %v105, 0
  %v266 = vsel %vm147, %v106, 0
  %v269 = vsel %vm147, %v107, 0
  %v272 = vsel %vm147, %v108, 0
  %v275 = vsel %vm147, %v109, 0
  %v278 = vsel %vm147, %v110, 0
  %v281 = vsel %vm147, %v111, 0
  %v284 = vsel %vm147, %v112, 0
  %v287 = vsel %vm147, %v113, 0
  %v290 = vsel %vm147, %v114, 0
  %v293 = vsel %vm147, %v131, 0
  %v296 = vsel %vm147, %v132, 0
  %v299 = vsel %vm147, %v133, 0
  %v302 = vsel %vm147, %v134, 0
  %v305 = vsel %vm147, %v135, 0
  %v308 = vsel %vm147, %v136, 0
  %v311 = vsel %vm147, %v137, 0
  %v314 = vsel %vm147, %v138, 0
  %v317 = vsel %vm147, %v139, 0
  %v320 = vsel %vm147, %v140, 0
  %v323 = vsel %vm147, %v141, 0
  %v326 = vsel %vm147, %v142, 0
  %v329 = vsel %vm147, %v143, 0
  %v332 = vsel %vm147, %v144, 0
  %v335 = vsel %vm147, %v145, 0
  %v338 = vsel %vm147, %v146, 0
  %v341 = vsel %vm147, %v14, 0
  %343 = vmatpush.xpose.msra.mxu0 0.0
  %344 = vmatpush.xpose.msra.mxu0 0.0
  %345 = vmatpush.xpose.msra.mxu0 0.0
  %346 = vmatpush.xpose.msra.mxu0 0.0
  %347 = vmatpush.xpose.msra.mxu0 0.0
  %348 = vmatpush.xpose.msra.mxu0 0.0
  %349 = vmatpush.xpose.msra.mxu0 0.0
  %350 = vmatpush.xpose.msra.mxu0 0.0
  %351 = vmatpush.xpose.msra.mxu0 0.0
  %352 = vmatpush.xpose.msra.mxu0 0.0
  %353 = vmatpush.xpose.msra.mxu0 0.0
  %354 = vmatpush.xpose.msra.mxu0 0.0
  %355 = vmatpush.xpose.msra.mxu0 0.0
  %356 = vmatpush.xpose.msra.mxu0 0.0
  %357 = vmatpush.xpose.msra.mxu0 0.0
  %358 = vmatpush.xpose.msra.mxu0 %v341
  %359 = vmatmul.f32.gmra.mxu0 %v149
  %v360 = vpop.f32.mrf.mxu0
  %v361 = vadd.f32 0.0, %v360
  %362 = vmatmul.f32.gmra.mxu0 %v152
  %v363 = vpop.f32.mrf.mxu0
  %v364 = vadd.f32 0.0, %v363
  %365 = vmatmul.f32.gmra.mxu0 %v155
  %v366 = vpop.f32.mrf.mxu0
  %v367 = vadd.f32 0.0, %v366
  %368 = vmatmul.f32.gmra.mxu0 %v158
  %v369 = vpop.f32.mrf.mxu0
  %v370 = vadd.f32 0.0, %v369
  %371 = vmatmul.f32.gmra.mxu0 %v161
  %v372 = vpop.f32.mrf.mxu0
  %v373 = vadd.f32 0.0, %v372
  %374 = vmatmul.f32.gmra.mxu0 %v164
  %v375 = vpop.f32.mrf.mxu0
  %v376 = vadd.f32 0.0, %v375
  %377 = vmatmul.f32.gmra.mxu0 %v167
  %v378 = vpop.f32.mrf.mxu0
  %v379 = vadd.f32 0.0, %v378
  %380 = vmatmul.f32.gmra.mxu0 %v170
  %v381 = vpop.f32.mrf.mxu0
  %v382 = vadd.f32 0.0, %v381
  %383 = vmatmul.f32.gmra.mxu0 %v173
  %v384 = vpop.f32.mrf.mxu0
  %v385 = vadd.f32 0.0, %v384
  %386 = vmatmul.f32.gmra.mxu0 %v176
  %v387 = vpop.f32.mrf.mxu0
  %v388 = vadd.f32 0.0, %v387
  %389 = vmatmul.f32.gmra.mxu0 %v179
  %v390 = vpop.f32.mrf.mxu0
  %v391 = vadd.f32 0.0, %v390
  %392 = vmatmul.f32.gmra.mxu0 %v182
  %v393 = vpop.f32.mrf.mxu0
  %v394 = vadd.f32 0.0, %v393
  %395 = vmatmul.f32.gmra.mxu0 %v185
  %v396 = vpop.f32.mrf.mxu0
  %v397 = vadd.f32 0.0, %v396
  %398 = vmatmul.f32.gmra.mxu0 %v188
  %v399 = vpop.f32.mrf.mxu0
  %v400 = vadd.f32 0.0, %v399
  %401 = vmatmul.f32.gmra.mxu0 %v191
  %v402 = vpop.f32.mrf.mxu0
  %v403 = vadd.f32 0.0, %v402
  %404 = vmatmul.f32.gmra.mxu0 %v194
  %v405 = vpop.f32.mrf.mxu0
  %v406 = vadd.f32 0.0, %v405
  %407 = vmatmul.f32.gmra.mxu0 %v197
  %v408 = vpop.f32.mrf.mxu0
  %v409 = vadd.f32 0.0, %v408
  %410 = vmatmul.f32.gmra.mxu0 %v200
  %v411 = vpop.f32.mrf.mxu0
  %v412 = vadd.f32 0.0, %v411
  %413 = vmatmul.f32.gmra.mxu0 %v203
  %v414 = vpop.f32.mrf.mxu0
  %v415 = vadd.f32 0.0, %v414
  %416 = vmatmul.f32.gmra.mxu0 %v206
  %v417 = vpop.f32.mrf.mxu0
  %v418 = vadd.f32 0.0, %v417
  %419 = vmatmul.f32.gmra.mxu0 %v209
  %v420 = vpop.f32.mrf.mxu0
  %v421 = vadd.f32 0.0, %v420
  %422 = vmatmul.f32.gmra.mxu0 %v212
  %v423 = vpop.f32.mrf.mxu0
  %v424 = vadd.f32 0.0, %v423
  %425 = vmatmul.f32.gmra.mxu0 %v215
  %v426 = vpop.f32.mrf.mxu0
  %v427 = vadd.f32 0.0, %v426
  %428 = vmatmul.f32.gmra.mxu0 %v218
  %v429 = vpop.f32.mrf.mxu0
  %v430 = vadd.f32 0.0, %v429
  %431 = vmatmul.f32.gmra.mxu0 %v221
  %v432 = vpop.f32.mrf.mxu0
  %v433 = vadd.f32 0.0, %v432
  %434 = vmatmul.f32.gmra.mxu0 %v224
  %v435 = vpop.f32.mrf.mxu0
  %v436 = vadd.f32 0.0, %v435
  %437 = vmatmul.f32.gmra.mxu0 %v227
  %v438 = vpop.f32.mrf.mxu0
  %v439 = vadd.f32 0.0, %v438
  %440 = vmatmul.f32.gmra.mxu0 %v230
  %v441 = vpop.f32.mrf.mxu0
  %v442 = vadd.f32 0.0, %v441
  %443 = vmatmul.f32.gmra.mxu0 %v233
  %v444 = vpop.f32.mrf.mxu0
  %v445 = vadd.f32 0.0, %v444
  %446 = vmatmul.f32.gmra.mxu0 %v236
  %v447 = vpop.f32.mrf.mxu0
  %v448 = vadd.f32 0.0, %v447
  %449 = vmatmul.f32.gmra.mxu0 %v239
  %v450 = vpop.f32.mrf.mxu0
  %v451 = vadd.f32 0.0, %v450
  %452 = vmatmul.f32.gmra.mxu0 %v242
  %v453 = vpop.f32.mrf.mxu0
  %v454 = vadd.f32 0.0, %v453
  %455 = vmatmul.f32.gmra.mxu0 %v245
  %v456 = vpop.f32.mrf.mxu0
  %v457 = vadd.f32 0.0, %v456
  %458 = vmatmul.f32.gmra.mxu0 %v248
  %v459 = vpop.f32.mrf.mxu0
  %v460 = vadd.f32 0.0, %v459
  %461 = vmatmul.f32.gmra.mxu0 %v251
  %v462 = vpop.f32.mrf.mxu0
  %v463 = vadd.f32 0.0, %v462
  %464 = vmatmul.f32.gmra.mxu0 %v254
  %v465 = vpop.f32.mrf.mxu0
  %v466 = vadd.f32 0.0, %v465
  %467 = vmatmul.f32.gmra.mxu0 %v257
  %v468 = vpop.f32.mrf.mxu0
  %v469 = vadd.f32 0.0, %v468
  %470 = vmatmul.f32.gmra.mxu0 %v260
  %v471 = vpop.f32.mrf.mxu0
  %v472 = vadd.f32 0.0, %v471
  %473 = vmatmul.f32.gmra.mxu0 %v263
  %v474 = vpop.f32.mrf.mxu0
  %v475 = vadd.f32 0.0, %v474
  %476 = vmatmul.f32.gmra.mxu0 %v266
  %v477 = vpop.f32.mrf.mxu0
  %v478 = vadd.f32 0.0, %v477
  %479 = vmatmul.f32.gmra.mxu0 %v269
  %v480 = vpop.f32.mrf.mxu0
  %v481 = vadd.f32 0.0, %v480
  %482 = vmatmul.f32.gmra.mxu0 %v272
  %v483 = vpop.f32.mrf.mxu0
  %v484 = vadd.f32 0.0, %v483
  %485 = vmatmul.f32.gmra.mxu0 %v275
  %v486 = vpop.f32.mrf.mxu0
  %v487 = vadd.f32 0.0, %v486
  %488 = vmatmul.f32.gmra.mxu0 %v278
  %v489 = vpop.f32.mrf.mxu0
  %v490 = vadd.f32 0.0, %v489
  %491 = vmatmul.f32.gmra.mxu0 %v281
  %v492 = vpop.f32.mrf.mxu0
  %v493 = vadd.f32 0.0, %v492
  %494 = vmatmul.f32.gmra.mxu0 %v284
  %v495 = vpop.f32.mrf.mxu0
  %v496 = vadd.f32 0.0, %v495
  %497 = vmatmul.f32.gmra.mxu0 %v287
  %v498 = vpop.f32.mrf.mxu0
  %v499 = vadd.f32 0.0, %v498
  %500 = vmatmul.f32.gmra.mxu0 %v290
  %v501 = vpop.f32.mrf.mxu0
  %v502 = vadd.f32 0.0, %v501
  %503 = vmatmul.f32.gmra.mxu0 %v293
  %v504 = vpop.f32.mrf.mxu0
  %v505 = vadd.f32 0.0, %v504
  %506 = vmatmul.f32.gmra.mxu0 %v296
  %v507 = vpop.f32.mrf.mxu0
  %v508 = vadd.f32 0.0, %v507
  %509 = vmatmul.f32.gmra.mxu0 %v299
  %v510 = vpop.f32.mrf.mxu0
  %v511 = vadd.f32 0.0, %v510
  %512 = vmatmul.f32.gmra.mxu0 %v302
  %v513 = vpop.f32.mrf.mxu0
  %v514 = vadd.f32 0.0, %v513
  %515 = vmatmul.f32.gmra.mxu0 %v305
  %v516 = vpop.f32.mrf.mxu0
  %v517 = vadd.f32 0.0, %v516
  %518 = vmatmul.f32.gmra.mxu0 %v308
  %v519 = vpop.f32.mrf.mxu0
  %v520 = vadd.f32 0.0, %v519
  %521 = vmatmul.f32.gmra.mxu0 %v311
  %v522 = vpop.f32.mrf.mxu0
  %v523 = vadd.f32 0.0, %v522
  %524 = vmatmul.f32.gmra.mxu0 %v314
  %v525 = vpop.f32.mrf.mxu0
  %v526 = vadd.f32 0.0, %v525
  %527 = vmatmul.f32.gmra.mxu0 %v317
  %v528 = vpop.f32.mrf.mxu0
  %v529 = vadd.f32 0.0, %v528
  %530 = vmatmul.f32.gmra.mxu0 %v320
  %v531 = vpop.f32.mrf.mxu0
  %v532 = vadd.f32 0.0, %v531
  %533 = vmatmul.f32.gmra.mxu0 %v323
  %v534 = vpop.f32.mrf.mxu0
  %v535 = vadd.f32 0.0, %v534
  %536 = vmatmul.f32.gmra.mxu0 %v326
  %v537 = vpop.f32.mrf.mxu0
  %v538 = vadd.f32 0.0, %v537
  %539 = vmatmul.f32.gmra.mxu0 %v329
  %v540 = vpop.f32.mrf.mxu0
  %v541 = vadd.f32 0.0, %v540
  %542 = vmatmul.f32.gmra.mxu0 %v332
  %v543 = vpop.f32.mrf.mxu0
  %v544 = vadd.f32 0.0, %v543
  %545 = vmatmul.f32.gmra.mxu0 %v335
  %v546 = vpop.f32.mrf.mxu0
  %v547 = vadd.f32 0.0, %v546
  %548 = vmatmul.f32.gmra.mxu0 %v338
  %v549 = vpop.f32.mrf.mxu0
  %v550 = vadd.f32 0.0, %v549
  %551 = vdwg.mxu0
  %552 = vxpose.xlu0.b32.start [1/16] %v361, 128
  %553 = vxpose.xlu0.b32.cont [2/16] %v364, 128
  %554 = vxpose.xlu0.b32.cont [3/16] %v367, 128
  %555 = vxpose.xlu0.b32.cont [4/16] %v370, 128
  %556 = vxpose.xlu0.b32.cont [5/16] %v373, 128
  %557 = vxpose.xlu0.b32.cont [6/16] %v376, 128
  %558 = vxpose.xlu0.b32.cont [7/16] %v379, 128
  %559 = vxpose.xlu0.b32.cont [8/16] %v382, 128
  %560 = vxpose.xlu0.b32.cont [9/16] %v385, 128
  %561 = vxpose.xlu0.b32.cont [10/16] %v388, 128
  %562 = vxpose.xlu0.b32.cont [11/16] %v391, 128
  %563 = vxpose.xlu0.b32.cont [12/16] %v394, 128
  %564 = vxpose.xlu0.b32.cont [13/16] %v397, 128
  %565 = vxpose.xlu0.b32.cont [14/16] %v400, 128
  %566 = vxpose.xlu0.b32.cont [15/16] %v403, 128
  %567 = vxpose.xlu0.b32.end [16/16] %v406, 128
  %v568 = vpop.trf.xlu0
  %v569 = vpop.trf.xlu0
  %v570 = vpop.trf.xlu0
  %v571 = vpop.trf.xlu0
  %v572 = vpop.trf.xlu0
  %v573 = vpop.trf.xlu0
  %v574 = vpop.trf.xlu0
  %v575 = vpop.trf.xlu0
  %v576 = vpop.trf.xlu0
  %v577 = vpop.trf.xlu0
  %v578 = vpop.trf.xlu0
  %v579 = vpop.trf.xlu0
  %v580 = vpop.trf.xlu0
  %v581 = vpop.trf.xlu0
  %v582 = vpop.trf.xlu0
  %v583 = vpop.trf.xlu0
  %584 = vxpose.xlu0.b32.start [1/16] %v409, 128
  %585 = vxpose.xlu0.b32.cont [2/16] %v412, 128
  %586 = vxpose.xlu0.b32.cont [3/16] %v415, 128
  %587 = vxpose.xlu0.b32.cont [4/16] %v418, 128
  %588 = vxpose.xlu0.b32.cont [5/16] %v421, 128
  %589 = vxpose.xlu0.b32.cont [6/16] %v424, 128
  %590 = vxpose.xlu0.b32.cont [7/16] %v427, 128
  %591 = vxpose.xlu0.b32.cont [8/16] %v430, 128
  %592 = vxpose.xlu0.b32.cont [9/16] %v433, 128
  %593 = vxpose.xlu0.b32.cont [10/16] %v436, 128
  %594 = vxpose.xlu0.b32.cont [11/16] %v439, 128
  %595 = vxpose.xlu0.b32.cont [12/16] %v442, 128
  %596 = vxpose.xlu0.b32.cont [13/16] %v445, 128
  %597 = vxpose.xlu0.b32.cont [14/16] %v448, 128
  %598 = vxpose.xlu0.b32.cont [15/16] %v451, 128
  %599 = vxpose.xlu0.b32.end [16/16] %v454, 128
  %v600 = vpop.trf.xlu0
  %v601 = vpop.trf.xlu0
  %v602 = vpop.trf.xlu0
  %v603 = vpop.trf.xlu0
  %v604 = vpop.trf.xlu0
  %v605 = vpop.trf.xlu0
  %v606 = vpop.trf.xlu0
  %v607 = vpop.trf.xlu0
  %v608 = vpop.trf.xlu0
  %v609 = vpop.trf.xlu0
  %v610 = vpop.trf.xlu0
  %v611 = vpop.trf.xlu0
  %v612 = vpop.trf.xlu0
  %v613 = vpop.trf.xlu0
  %v614 = vpop.trf.xlu0
  %v615 = vpop.trf.xlu0
  %616 = vxpose.xlu0.b32.start [1/16] %v457, 128
  %617 = vxpose.xlu0.b32.cont [2/16] %v460, 128
  %618 = vxpose.xlu0.b32.cont [3/16] %v463, 128
  %619 = vxpose.xlu0.b32.cont [4/16] %v466, 128
  %620 = vxpose.xlu0.b32.cont [5/16] %v469, 128
  %621 = vxpose.xlu0.b32.cont [6/16] %v472, 128
  %622 = vxpose.xlu0.b32.cont [7/16] %v475, 128
  %623 = vxpose.xlu0.b32.cont [8/16] %v478, 128
  %624 = vxpose.xlu0.b32.cont [9/16] %v481, 128
  %625 = vxpose.xlu0.b32.cont [10/16] %v484, 128
  %626 = vxpose.xlu0.b32.cont [11/16] %v487, 128
  %627 = vxpose.xlu0.b32.cont [12/16] %v490, 128
  %628 = vxpose.xlu0.b32.cont [13/16] %v493, 128
  %629 = vxpose.xlu0.b32.cont [14/16] %v496, 128
  %630 = vxpose.xlu0.b32.cont [15/16] %v499, 128
  %631 = vxpose.xlu0.b32.end [16/16] %v502, 128
  %v632 = vpop.trf.xlu0
  %v633 = vpop.trf.xlu0
  %v634 = vpop.trf.xlu0
  %v635 = vpop.trf.xlu0
  %v636 = vpop.trf.xlu0
  %v637 = vpop.trf.xlu0
  %v638 = vpop.trf.xlu0
  %v639 = vpop.trf.xlu0
  %v640 = vpop.trf.xlu0
  %v641 = vpop.trf.xlu0
  %v642 = vpop.trf.xlu0
  %v643 = vpop.trf.xlu0
  %v644 = vpop.trf.xlu0
  %v645 = vpop.trf.xlu0
  %v646 = vpop.trf.xlu0
  %v647 = vpop.trf.xlu0
  %648 = vxpose.xlu0.b32.start [1/16] %v505, 128
  %649 = vxpose.xlu0.b32.cont [2/16] %v508, 128
  %650 = vxpose.xlu0.b32.cont [3/16] %v511, 128
  %651 = vxpose.xlu0.b32.cont [4/16] %v514, 128
  %652 = vxpose.xlu0.b32.cont [5/16] %v517, 128
  %653 = vxpose.xlu0.b32.cont [6/16] %v520, 128
  %654 = vxpose.xlu0.b32.cont [7/16] %v523, 128
  %655 = vxpose.xlu0.b32.cont [8/16] %v526, 128
  %656 = vxpose.xlu0.b32.cont [9/16] %v529, 128
  %657 = vxpose.xlu0.b32.cont [10/16] %v532, 128
  %658 = vxpose.xlu0.b32.cont [11/16] %v535, 128
  %659 = vxpose.xlu0.b32.cont [12/16] %v538, 128
  %660 = vxpose.xlu0.b32.cont [13/16] %v541, 128
  %661 = vxpose.xlu0.b32.cont [14/16] %v544, 128
  %662 = vxpose.xlu0.b32.cont [15/16] %v547, 128
  %663 = vxpose.xlu0.b32.end [16/16] %v550, 128
  %v664 = vpop.trf.xlu0
  %v665 = vpop.trf.xlu0
  %v666 = vpop.trf.xlu0
  %v667 = vpop.trf.xlu0
  %v668 = vpop.trf.xlu0
  %v669 = vpop.trf.xlu0
  %v670 = vpop.trf.xlu0
  %v671 = vpop.trf.xlu0
  %v672 = vpop.trf.xlu0
  %v673 = vpop.trf.xlu0
  %v674 = vpop.trf.xlu0
  %v675 = vpop.trf.xlu0
  %v676 = vpop.trf.xlu0
  %v677 = vpop.trf.xlu0
  %v678 = vpop.trf.xlu0
  %v679 = vpop.trf.xlu0
  %v680 = vld [vmem:[%s2] sm:$0xf]
  %682 = vset.pattern.permute.xlu0 0
  %683 = vperm.xlu0 %682, %v680
  %v684 = vpop.permute.xlu0 %683
  %v686 = vadd.f32 %v568, %v684
  %v687 = vadd.f32 %v600, %v684
  %v688 = vadd.f32 %v632, %v684
  %v689 = vadd.f32 %v664, %v684
  %v694 = vrot.slane %v687, 4
  %v695 = vrot.slane %v689, 4
  %vm696 = vcmask 1043456
  %v697 = vsel %vm696, %v686, %v694
  %v698 = vsel %vm696, %v688, %v695
  %701 = vst [vmem:[%s3] sm:$0xff] %v697
  %702 = vst [vmem:[%s3 + $0x8] sm:$0xff] %v698
  // Predicated region
  $region14: #{outconv_1x1.1} parent=0 // pred_check
    _
  $region15: #{outconv_1x1.1} parent=0 // pred_check_branch
    %704 = sbr.rel (0) target = $region17
  $region16: #{outconv_1x1.1} parent=0 // pred_region
    _
  $region17: #{outconv_1x1.1} parent=0 // pred_fallthru
    _
  // Predicated region
  $region18: #{outconv_1x1.1} parent=0 // pred_check
    _
  $region19: #{outconv_1x1.1} parent=0 // pred_check_branch
    %706 = sbr.rel (0) target = $region21
  $region20: #{outconv_1x1.1} parent=0 // pred_region
    _
  $region21: #{outconv_1x1.1} parent=0 // pred_fallthru
    _

</llo_original>
